<compile_context>
chip_gen: v5e
topology: v5e:2x2
jax: 0.10.0
libtpu: 0.0.40
codegen_flags: <defaults>
</compile_context>

<pallas_src>
import functools

import jax
import jax.numpy as jnp
from jax.experimental import pallas as pl
from jax.experimental.pallas import tpu as pltpu


def _round_up(x, m):
    return ((x + m - 1) // m) * m


def _mf_kernel(wu_t_ref, ui_t_ref, uid_ref, iid_ref, out_ref):
    # wu_t_ref : (Kp, Up) f32  augmented user table, transposed+padded, VMEM-resident
    # ui_t_ref : (Kp, Ip) f32  augmented item table, transposed+padded, VMEM-resident
    # uid_ref  : (1, TB) int32 user ids for this batch tile (lane-dense)
    # iid_ref  : (1, TB) int32 item ids for this batch tile (lane-dense)
    # out_ref  : (1, TB) f32   predictions (lane-dense)
    n_users_p = wu_t_ref.shape[1]
    n_items_p = ui_t_ref.shape[1]
    tb = out_ref.shape[1]

    # One-hot selection matrices (Up, TB) / (Ip, TB), built on the VPU.
    u_iota = jax.lax.broadcasted_iota(jnp.int32, (n_users_p, tb), 0)
    i_iota = jax.lax.broadcasted_iota(jnp.int32, (n_items_p, tb), 0)
    oh_u = jnp.where(u_iota == uid_ref[...], 1.0, 0.0).astype(jnp.float32)
    oh_i = jnp.where(i_iota == iid_ref[...], 1.0, 0.0).astype(jnp.float32)

    # Fused gather on the MXU: (Kp, Up) @ (Up, TB) -> (Kp, TB).
    # Exact: each output element is one table value times 1.0 plus zeros.
    wu = jnp.dot(wu_t_ref[...], oh_u, preferred_element_type=jnp.float32)
    ui = jnp.dot(ui_t_ref[...], oh_i, preferred_element_type=jnp.float32)

    # Row-wise dot over the (augmented) latent axis: sublane reduce -> lane-dense.
    # Padded latent rows are zero in both tables, so they contribute nothing.
    out_ref[...] = jnp.sum(wu * ui, axis=0, keepdims=True)


@functools.partial(jax.jit, static_argnames=("tile_b",))
def mf_forward(params, user_ids, item_ids, tile_b=512):
    """Pallas implementation of TorchMatrixFactorizationModel.forward."""
    w_user, u_item, bias_user, bias_item, global_mean = params
    n_users, k = w_user.shape
    n_items = u_item.shape[0]
    b = user_ids.shape[0]

    gm = jnp.asarray(global_mean, jnp.float32)

    # --- fold biases + global mean into 3 extra latent dims -----------------
    wu_aug = jnp.concatenate(
        [w_user.astype(jnp.float32),
         bias_user.astype(jnp.float32)[:, None],
         jnp.ones((n_users, 1), jnp.float32),
         jnp.full((n_users, 1), gm, dtype=jnp.float32)], axis=1)   # (U, K+3)
    ui_aug = jnp.concatenate(
        [u_item.astype(jnp.float32),
         jnp.ones((n_items, 1), jnp.float32),
         bias_item.astype(jnp.float32)[:, None],
         jnp.ones((n_items, 1), jnp.float32)], axis=1)             # (I, K+3)

    k_aug = k + 3
    kp = _round_up(k_aug, 8)        # sublane padding of the latent axis
    up = _round_up(n_users, 128)    # lane padding of the user table
    ip = _round_up(n_items, 128)    # lane padding of the item table

    # Transpose -> (K, N) so the latent axis sits on sublanes and the in-kernel
    # reduction lands lane-dense; zero-pad to TPU tile boundaries.
    wu_t = jnp.zeros((kp, up), jnp.float32).at[:k_aug, :n_users].set(wu_aug.T)
    ui_t = jnp.zeros((kp, ip), jnp.float32).at[:k_aug, :n_items].set(ui_aug.T)

    # Lane-dense id rows, padded to a whole number of batch tiles.
    # Padding ids are 0 (always a valid row); padded outputs are sliced away.
    bp = _round_up(max(b, 1), tile_b)
    uid = jnp.zeros((1, bp), jnp.int32).at[0, :b].set(user_ids.astype(jnp.int32))
    iid = jnp.zeros((1, bp), jnp.int32).at[0, :b].set(item_ids.astype(jnp.int32))

    grid = (bp // tile_b,)

    out = pl.pallas_call(
        _mf_kernel,
        out_shape=jax.ShapeDtypeStruct((1, bp), jnp.float32),
        grid=grid,
        in_specs=[
            pl.BlockSpec((kp, up), lambda i: (0, 0)),     # user table (resident)
            pl.BlockSpec((kp, ip), lambda i: (0, 0)),     # item table (resident)
            pl.BlockSpec((1, tile_b), lambda i: (0, i)),  # user ids (lane-dense)
            pl.BlockSpec((1, tile_b), lambda i: (0, i)),  # item ids (lane-dense)
        ],
        out_specs=pl.BlockSpec((1, tile_b), lambda i: (0, i)),
        compiler_params=pltpu.CompilerParams(
            dimension_semantics=("parallel",)),
    )(wu_t, ui_t, uid, iid)

    return out[0, :b]  # (B,)


def init_params(key, n_users, n_items, k, global_mean):
    """Parameter shapes mirroring the PyTorch module (f32 embeddings + biases)."""
    k_user, k_item, k_bu, k_bi = jax.random.split(key, 4)
    # nn.Embedding default init ~ N(0, 1).
    w_user = jax.random.normal(k_user, (n_users, k), dtype=jnp.float32)
    u_item = jax.random.normal(k_item, (n_items, k), dtype=jnp.float32)
    # Biases are zero-initialised in the module; randomise them here (as if
    # after training) so the bias path of the forward is actually exercised.
    bias_user = 0.1 * jax.random.normal(k_bu, (n_users,), dtype=jnp.float32)
    bias_item = 0.1 * jax.random.normal(k_bi, (n_items,), dtype=jnp.float32)
    gm = jnp.asarray(global_mean, dtype=jnp.float32)
    return (w_user, u_item, bias_user, bias_item, gm)


if __name__ == "__main__":
    n_users, n_items, k = 64, 96, 16
    batch = 1000            # deliberately not a multiple of the tile
    tile_b = 256            # -> padded batch 1024, grid (4,) across both TCs
    global_mean = 3.5

    key = jax.random.PRNGKey(0)
    pkey, ukey, ikey = jax.random.split(key, 3)

    params = init_params(pkey, n_users, n_items, k, global_mean)
    user_ids = jax.random.randint(ukey, (batch,), 0, n_users, dtype=jnp.int32)
    item_ids = jax.random.randint(ikey, (batch,), 0, n_items, dtype=jnp.int32)

    out = mf_forward(params, user_ids, item_ids, tile_b=tile_b)
    out = jax.block_until_ready(out)

    # pure-JAX reference for a sanity check
    w_user, u_item, bias_user, bias_item, gm = params
    ref = (bias_user[user_ids] + bias_item[item_ids] + gm
           + jnp.einsum("ij,ij->i", w_user[user_ids], u_item[item_ids]))
    assert out.shape == (batch,)
    assert jnp.allclose(out, ref, rtol=1e-5, atol=1e-5), \
        float(jnp.max(jnp.abs(out - ref)))

    print("KERNEL_OK")
</pallas_src>

<mosaic_0001>
module attributes {stable_mosaic.version = 11 : i64} {
  func.func @_mf_kernel(%arg0: i32, %arg1: memref<24x128xf32, #tpu.memory_space<vmem>>, %arg2: memref<24x128xf32, #tpu.memory_space<vmem>>, %arg3: memref<1x256xi32, #tpu.memory_space<vmem>>, %arg4: memref<1x256xi32, #tpu.memory_space<vmem>>, %arg5: memref<1x256xf32, #tpu.memory_space<vmem>>) attributes {dimension_semantics = [#tpu.dimension_semantics<parallel>], iteration_bounds = array<i64: 4>, scalar_prefetch = 0 : i64, scratch_operands = 0 : i64, tpu.core_type = #tpu.core_type<tc>, window_params = [{pipeline_mode = #tpu.pipeline_mode<synchronous>, transform_indices = @transform_0, window_bounds = array<i64: 24, 128>}, {pipeline_mode = #tpu.pipeline_mode<synchronous>, transform_indices = @transform_1, window_bounds = array<i64: 24, 128>}, {transform_indices = @transform_2, window_bounds = array<i64: 1, 256>}, {transform_indices = @transform_3, window_bounds = array<i64: 1, 256>}, {transform_indices = @transform_4, window_bounds = array<i64: 1, 256>}]} {
    %0 = tpu.iota {dimensions = array<i32: 0>} : vector<128x256xi32>
    %1 = tpu.iota {dimensions = array<i32: 0>} : vector<128x256xi32>
    %c0 = arith.constant 0 : index
    %c0_0 = arith.constant 0 : index
    %2 = vector.load %arg3[%c0, %c0_0] : memref<1x256xi32, #tpu.memory_space<vmem>>, vector<1x256xi32>
    %3 = vector.broadcast %2 : vector<1x256xi32> to vector<128x256xi32>
    %4 = arith.cmpi eq, %0, %3 : vector<128x256xi32>
    %cst = arith.constant 1.000000e+00 : f32
    %cst_1 = arith.constant 0.000000e+00 : f32
    %5 = vector.broadcast %cst : f32 to vector<128x256xf32>
    %6 = vector.broadcast %cst_1 : f32 to vector<128x256xf32>
    %7 = arith.select %4, %5, %6 : vector<128x256xi1>, vector<128x256xf32>
    %c0_2 = arith.constant 0 : index
    %c0_3 = arith.constant 0 : index
    %8 = vector.load %arg4[%c0_2, %c0_3] : memref<1x256xi32, #tpu.memory_space<vmem>>, vector<1x256xi32>
    %9 = vector.broadcast %8 : vector<1x256xi32> to vector<128x256xi32>
    %10 = arith.cmpi eq, %1, %9 : vector<128x256xi32>
    %cst_4 = arith.constant 1.000000e+00 : f32
    %cst_5 = arith.constant 0.000000e+00 : f32
    %11 = vector.broadcast %cst_4 : f32 to vector<128x256xf32>
    %12 = vector.broadcast %cst_5 : f32 to vector<128x256xf32>
    %13 = arith.select %10, %11, %12 : vector<128x256xi1>, vector<128x256xf32>
    %c0_6 = arith.constant 0 : index
    %c0_7 = arith.constant 0 : index
    %14 = vector.load %arg1[%c0_6, %c0_7] : memref<24x128xf32, #tpu.memory_space<vmem>>, vector<24x128xf32>
    %cst_8 = arith.constant dense<0.000000e+00> : vector<24x256xf32>
    %15 = tpu.matmul %14, %7, %cst_8 {dimension_numbers = #tpu.dot_dimension_numbers<[1], [0], [0], [1], [0, 0, 1, 1], [], []>} : vector<24x128xf32>, vector<128x256xf32>, vector<24x256xf32> -> vector<24x256xf32>
    %c0_9 = arith.constant 0 : index
    %c0_10 = arith.constant 0 : index
    %16 = vector.load %arg2[%c0_9, %c0_10] : memref<24x128xf32, #tpu.memory_space<vmem>>, vector<24x128xf32>
    %cst_11 = arith.constant dense<0.000000e+00> : vector<24x256xf32>
    %17 = tpu.matmul %16, %13, %cst_11 {dimension_numbers = #tpu.dot_dimension_numbers<[1], [0], [0], [1], [0, 0, 1, 1], [], []>} : vector<24x128xf32>, vector<128x256xf32>, vector<24x256xf32> -> vector<24x256xf32>
    %18 = arith.mulf %15, %17 : vector<24x256xf32>
    %cst_12 = arith.constant dense<0.000000e+00> : vector<256xf32>
    %19 = vector.multi_reduction <add>, %18, %cst_12 [0] : vector<24x256xf32> to vector<256xf32>
    %20 = vector.shape_cast %19 : vector<256xf32> to vector<1x256xf32>
    %c0_13 = arith.constant 0 : index
    %c0_14 = arith.constant 0 : index
    %21 = vector.load %arg5[%c0_13, %c0_14] : memref<1x256xf32, #tpu.memory_space<vmem>>, vector<1x256xf32>
    tpu.vector_store %arg5[%c0_13, %c0_14], %20 {strides = array<i32>} : memref<1x256xf32, #tpu.memory_space<vmem>>, vector<1x256xf32>,
    return
  }
  func.func @transform_0(%arg0: i32) -> (i32, i32) {
    %c0_i32 = arith.constant 0 : i32
    %c0_i32_0 = arith.constant 0 : i32
    %c0_i32_1 = arith.constant 0 : i32
    return %c0_i32, %c0_i32_0 : i32, i32
  }
  func.func @transform_1(%arg0: i32) -> (i32, i32) {
    %c0_i32 = arith.constant 0 : i32
    %c0_i32_0 = arith.constant 0 : i32
    %c0_i32_1 = arith.constant 0 : i32
    return %c0_i32, %c0_i32_0 : i32, i32
  }
  func.func @transform_2(%arg0: i32) -> (i32, i32) {
    %c0_i32 = arith.constant 0 : i32
    %c0_i32_0 = arith.constant 0 : i32
    return %c0_i32, %arg0 : i32, i32
  }
  func.func @transform_3(%arg0: i32) -> (i32, i32) {
    %c0_i32 = arith.constant 0 : i32
    %c0_i32_0 = arith.constant 0 : i32
    return %c0_i32, %arg0 : i32, i32
  }
  func.func @transform_4(%arg0: i32) -> (i32, i32) {
    %c0_i32 = arith.constant 0 : i32
    %c0_i32_0 = arith.constant 0 : i32
    return %c0_i32, %arg0 : i32, i32
  }
}

</mosaic_0001>

<llo_original>
// kernel: mf_forward.1
$region0: #{mf_forward.1}
  #allocation0 [shape = 'u32[]', space=smem, size = 0x4, offset = 0x4, fixed_abs, tag = 'smem constant byte address 0x4 - core index']
  #allocation1 [shape = 'u32[72,128]{1,0:T(1,128)}', space=vmem, size = 0x9000, scoped, tag = 'internal scratch']
  %s0 = inlined_call_operand.vmem [shape: f32[24,128], index: 0, kind: input, shape index: {}]
  %s1 = inlined_call_operand.vmem [shape: f32[24,128], index: 1, kind: input, shape index: {}]
  %s2 = inlined_call_operand.vmem [shape: s32[1,1024], index: 2, kind: input, shape index: {}]
  %s3 = inlined_call_operand.vmem [shape: s32[1,1024], index: 3, kind: input, shape index: {}]
  %s4 = inlined_call_operand.hbm [shape: f32[1,1024], index: 4, kind: output, shape index: {}]
  %s5 = sld [smem:[#allocation0]]
  $region49: #{mf_forward.1} parent=0
    _
  %s7 = ssub.s32 1, %s5
  %s8 = scalar_select 0, %s7, %s5
  $region1: #{mf_forward.1} parent=0
    #allocation2 [shape = 'u8[2048]{0}', space=vmem, size = 0x800, scoped, tag = 'output window, operand 0']
    #allocation3 [shape = 's32[2]{0}', space=sflag, size = 0x8, scoped, tag = 'scoped memory for mf_forward.1']
    %9 = vsyncpa [#allocation3], 0
    %s10 = scalar_lea.sflag [#allocation3], 1
    %11 = vsyncpa %s10, 0
    loop: start=0, step=1, limit=6
    $region2: #{mf_forward.1} parent=1 // loop_pre_header
      _
    $region3: #{mf_forward.1} parent=1 // loop_header
      %s13 = sphi 0, %s17
      %p14 = scmp.ge.s32.totalorder %s13, 6
      %s21 = sphi 0, %s21
      %s23 = sphi 0, %s21
      %s24 = sphi 0, %s23
      %s38 = sphi 0, %s24
      %s42 = sphi 0, %s42
      %s44 = sphi 0, %s42
      %s45 = sphi 0, %s44
      %s59 = sphi 0, %s45
      %s65 = sphi 0, %s67
      %s68 = sphi 0, %s65
      %s69 = sphi 0, %s68
      %s85 = sphi 0, %s69
      %s91 = sphi 0, %s93
      %s94 = sphi 0, %s91
      %s95 = sphi 0, %s94
      %s111 = sphi 0, %s95
      %s117 = sphi 0, %s119
      %s120 = sphi 0, %s117
      %s121 = sphi 0, %s120
      %s137 = sphi 0, %s121
    $region4: #{mf_forward.1} parent=1 // loop_header_branch
      %16 = sbr.rel (%p14) target = $region8
    $region5: #{mf_forward.1} parent=1 // loop_body
      %s18 = ssub.s32 %s13, 1
      %s19 = ssub.s32 %s13, 2
      %s20 = sadd.s32 %s13, 1
      %s22 = sadd.s32 %s21, 1
      %p25 = scmp.eq.s32.totalorder %s13, 3
      %p26 = scmp.ne.s32.totalorder %s21, %s23
      %p27 = scmp.eq.s32.totalorder %s13, 0
      %p28 = por %p26, %p27
      %p29 = scmp.ne.s32.totalorder %s21, %s23
      %p30 = scmp.eq.s32.totalorder %s18, 3
      %p31 = por %p29, %p30
      %p32 = scmp.ne.s32.totalorder %s23, %s24
      %p33 = scmp.eq.s32.totalorder %s18, 0
      %p34 = por %p32, %p33
      %p35 = scmp.ne.s32.totalorder %s23, %s24
      %p36 = scmp.eq.s32.totalorder %s19, 3
      %p37 = por %p35, %p36
      %p39 = scmp.ne.s32.totalorder %s24, %s38
      %p40 = scmp.eq.s32.totalorder %s19, 0
      %p41 = por %p39, %p40
      %s43 = sadd.s32 %s42, 1
      %p46 = scmp.eq.s32.totalorder %s13, 3
      %p47 = scmp.ne.s32.totalorder %s42, %s44
      %p48 = scmp.eq.s32.totalorder %s13, 0
      %p49 = por %p47, %p48
      %p50 = scmp.ne.s32.totalorder %s42, %s44
      %p51 = scmp.eq.s32.totalorder %s18, 3
      %p52 = por %p50, %p51
      %p53 = scmp.ne.s32.totalorder %s44, %s45
      %p54 = scmp.eq.s32.totalorder %s18, 0
      %p55 = por %p53, %p54
      %p56 = scmp.ne.s32.totalorder %s44, %s45
      %p57 = scmp.eq.s32.totalorder %s19, 3
      %p58 = por %p56, %p57
      %p60 = scmp.ne.s32.totalorder %s45, %s59
      %p61 = scmp.eq.s32.totalorder %s19, 0
      %p62 = por %p60, %p61
      %s63 = ssub.s32 %s13, %s20
      %p64 = scmp.eq.s32.totalorder %s63, 0
      %s66 = sadd.s32 %s65, 1
      %s67 = scalar_select %p64, %s65, %s66
      %p70 = pneg %p64
      %p71 = scmp.eq.s32.totalorder %s13, 3
      %p72 = por %p70, %p71
      %p73 = scmp.ne.s32.totalorder %s65, %s68
      %p74 = scmp.eq.s32.totalorder %s13, 0
      %p75 = por %p73, %p74
      %p76 = scmp.ne.s32.totalorder %s65, %s68
      %p77 = scmp.eq.s32.totalorder %s18, 3
      %p78 = por %p76, %p77
      %p79 = scmp.ne.s32.totalorder %s68, %s69
      %p80 = scmp.eq.s32.totalorder %s18, 0
      %p81 = por %p79, %p80
      %p82 = scmp.ne.s32.totalorder %s68, %s69
      %p83 = scmp.eq.s32.totalorder %s19, 3
      %p84 = por %p82, %p83
      %p86 = scmp.ne.s32.totalorder %s69, %s85
      %p87 = scmp.eq.s32.totalorder %s19, 0
      %p88 = por %p86, %p87
      %s89 = ssub.s32 %s13, %s20
      %p90 = scmp.eq.s32.totalorder %s89, 0
      %s92 = sadd.s32 %s91, 1
      %s93 = scalar_select %p90, %s91, %s92
      %p96 = pneg %p90
      %p97 = scmp.eq.s32.totalorder %s13, 3
      %p98 = por %p96, %p97
      %p99 = scmp.ne.s32.totalorder %s91, %s94
      %p100 = scmp.eq.s32.totalorder %s13, 0
      %p101 = por %p99, %p100
      %p102 = scmp.ne.s32.totalorder %s91, %s94
      %p103 = scmp.eq.s32.totalorder %s18, 3
      %p104 = por %p102, %p103
      %p105 = scmp.ne.s32.totalorder %s94, %s95
      %p106 = scmp.eq.s32.totalorder %s18, 0
      %p107 = por %p105, %p106
      %p108 = scmp.ne.s32.totalorder %s94, %s95
      %p109 = scmp.eq.s32.totalorder %s19, 3
      %p110 = por %p108, %p109
      %p112 = scmp.ne.s32.totalorder %s95, %s111
      %p113 = scmp.eq.s32.totalorder %s19, 0
      %p114 = por %p112, %p113
      %s115 = ssub.s32 %s13, %s20
      %p116 = scmp.eq.s32.totalorder %s115, 0
      %s118 = sadd.s32 %s117, 1
      %s119 = scalar_select %p116, %s117, %s118
      %p122 = pneg %p116
      %p123 = scmp.eq.s32.totalorder %s13, 3
      %p124 = por %p122, %p123
      %p125 = scmp.ne.s32.totalorder %s117, %s120
      %p126 = scmp.eq.s32.totalorder %s13, 0
      %p127 = por %p125, %p126
      %p128 = scmp.ne.s32.totalorder %s117, %s120
      %p129 = scmp.eq.s32.totalorder %s18, 3
      %p130 = por %p128, %p129
      %p131 = scmp.ne.s32.totalorder %s120, %s121
      %p132 = scmp.eq.s32.totalorder %s18, 0
      %p133 = por %p131, %p132
      %p134 = scmp.ne.s32.totalorder %s120, %s121
      %p135 = scmp.eq.s32.totalorder %s19, 3
      %p136 = por %p134, %p135
      %p138 = scmp.ne.s32.totalorder %s121, %s137
      %p139 = scmp.eq.s32.totalorder %s19, 0
      %p140 = por %p138, %p139
      %p141 = scmp.le.s32.totalorder 1, %s13
      %p142 = scmp.lt.s32.totalorder %s13, 5
      %p143 = pnand %p141, %p142
      %p144 = pneg %p143
      // Predicated region
      $region9: #{mf_forward.1} parent=5 // pred_check
        _
      $region10: #{mf_forward.1} parent=5 // pred_check_branch
        %146 = sbr.rel (%p143) target = $region12
      $region11: #{mf_forward.1} parent=5 // pred_region
        %s147 = ssub.s32 %s13, 1
        // Predicated region
        $region13: #{mf_forward.1} parent=11 // pred_check
          %p148 = pneg %p34
        $region14: #{mf_forward.1} parent=11 // pred_check_branch
          %150 = sbr.rel (%p148) target = $region16
        $region15: #{mf_forward.1} parent=11 // pred_region
          _
        $region16: #{mf_forward.1} parent=11 // pred_fallthru
          _
        // Predicated region
        $region17: #{mf_forward.1} parent=11 // pred_check
          %p151 = pneg %p55
        $region18: #{mf_forward.1} parent=11 // pred_check_branch
          %153 = sbr.rel (%p151) target = $region20
        $region19: #{mf_forward.1} parent=11 // pred_region
          _
        $region20: #{mf_forward.1} parent=11 // pred_fallthru
          _
      $region12: #{mf_forward.1} parent=5 // pred_fallthru
        _
      %p154 = scmp.lt.s32.totalorder %s13, 4
      // Predicated region
      $region21: #{mf_forward.1} parent=5 // pred_check
        %p155 = pneg %p154
      $region22: #{mf_forward.1} parent=5 // pred_check_branch
        %157 = sbr.rel (%p155) target = $region24
      $region23: #{mf_forward.1} parent=5 // pred_region
        // Predicated region
        $region25: #{mf_forward.1} parent=23 // pred_check
          %p158 = pneg %p75
        $region26: #{mf_forward.1} parent=23 // pred_check_branch
          %160 = sbr.rel (%p158) target = $region28
        $region27: #{mf_forward.1} parent=23 // pred_region
          %s161 = smul.u32 2, %s13
          %p162 = scmp.lt.s32.totalorder %s161, 7
          %s163 = scalar_select %p162, %s161, 7
          %s164 = scalar_lea.vmem %s2, %s163
          %s165 = smul.u32 2, %s13
        $region28: #{mf_forward.1} parent=23 // pred_fallthru
          _
        // Predicated region
        $region29: #{mf_forward.1} parent=23 // pred_check
          %p166 = pneg %p101
        $region30: #{mf_forward.1} parent=23 // pred_check_branch
          %168 = sbr.rel (%p166) target = $region32
        $region31: #{mf_forward.1} parent=23 // pred_region
          %s169 = smul.u32 2, %s13
          %p170 = scmp.lt.s32.totalorder %s169, 7
          %s171 = scalar_select %p170, %s169, 7
          %s172 = scalar_lea.vmem %s3, %s171
          %s173 = smul.u32 2, %s13
        $region32: #{mf_forward.1} parent=23 // pred_fallthru
          _
      $region24: #{mf_forward.1} parent=5 // pred_fallthru
        _
      %p174 = scmp.le.s32.totalorder 1, %s13
      %p175 = scmp.lt.s32.totalorder %s13, 5
      %p176 = pnand %p174, %p175
      %p177 = pneg %p176
      // Predicated region
      $region33: #{mf_forward.1} parent=5 // pred_check
        _
      $region34: #{mf_forward.1} parent=5 // pred_check_branch
        %179 = sbr.rel (%p176) target = $region36
      $region35: #{mf_forward.1} parent=5 // pred_region
        %s180 = ssub.s32 %s13, 1
        %p181 = pneg %p34
        %p182 = pneg %p31
        %p183 = pneg %p55
        %p184 = pneg %p52
        %s185 = smul.u32 2, %s18
        %p186 = scmp.lt.s32.totalorder %s185, 7
        %s187 = scalar_select %p186, %s185, 7
        %s188 = scalar_lea.vmem %s2, %s187
        %p189 = pneg %p81
        %p190 = pneg %p78
        %s191 = smul.u32 2, %s18
        %p192 = scmp.lt.s32.totalorder %s191, 7
        %s193 = scalar_select %p192, %s191, 7
        %s194 = scalar_lea.vmem %s3, %s193
        %p195 = pneg %p107
        %p196 = pneg %p104
        %p197 = pneg %p133
        %p198 = pneg %p130
        %s199 = sand.u32 %s120, 1
        %s200 = scalar_lea.sflag [#allocation3], %s199
        %s201 = sand.u32 %s120, 1
        %s202 = smul.addr %s201, 2
        %s203 = scalar_lea.vmem [#allocation2], %s202
        %s204 = smul.u32 2, %s18
        %p205 = scmp.lt.s32.totalorder %s204, 7
        %s206 = scalar_select %p205, %s204, 7
        %s207 = scalar_lea.vmem %s2, %s206
        %s208 = smul.u32 2, %s18
        %s209 = smul.u32 2, %s18
        %p210 = scmp.lt.s32.totalorder %s209, 7
        %s211 = scalar_select %p210, %s209, 7
        %s212 = scalar_lea.vmem %s3, %s211
        %s213 = smul.u32 2, %s18
        %s214 = smul.u32 2, %s18
        %v215 = vlaneseq
        %v216 = vshrl.u32 %v215, 7
        %v217 = vadd.s32 %v216, 8
        %v218 = vadd.s32 %v216, 16
        %v219 = vadd.s32 %v216, 24
        %v220 = vadd.s32 %v216, 32
        %v221 = vadd.s32 %v216, 40
        %v222 = vadd.s32 %v216, 48
        %v223 = vadd.s32 %v216, 56
        %v224 = vadd.s32 %v216, 64
        %v225 = vadd.s32 %v216, 72
        %v226 = vadd.s32 %v216, 80
        %v227 = vadd.s32 %v216, 88
        %v228 = vadd.s32 %v216, 96
        %v229 = vadd.s32 %v216, 104
        %v230 = vadd.s32 %v216, 112
        %v231 = vadd.s32 %v216, 120
        %v232 = vld [vmem:[%s207] sm:$0x3]
        %v233 = vperm.slane %v232, 0
        %v234 = vperm.slane %v232, 1
        %vm235 = vcmp.eq.s32.totalorder %v216, %v233
        %vm236 = vcmp.eq.s32.totalorder %v216, %v234
        %vm237 = vcmp.eq.s32.totalorder %v217, %v233
        %vm238 = vcmp.eq.s32.totalorder %v217, %v234
        %vm239 = vcmp.eq.s32.totalorder %v218, %v233
        %vm240 = vcmp.eq.s32.totalorder %v218, %v234
        %vm241 = vcmp.eq.s32.totalorder %v219, %v233
        %vm242 = vcmp.eq.s32.totalorder %v219, %v234
        %vm243 = vcmp.eq.s32.totalorder %v220, %v233
        %vm244 = vcmp.eq.s32.totalorder %v220, %v234
        %vm245 = vcmp.eq.s32.totalorder %v221, %v233
        %vm246 = vcmp.eq.s32.totalorder %v221, %v234
        %vm247 = vcmp.eq.s32.totalorder %v222, %v233
        %vm248 = vcmp.eq.s32.totalorder %v222, %v234
        %vm249 = vcmp.eq.s32.totalorder %v223, %v233
        %vm250 = vcmp.eq.s32.totalorder %v223, %v234
        %vm251 = vcmp.eq.s32.totalorder %v224, %v233
        %vm252 = vcmp.eq.s32.totalorder %v224, %v234
        %vm253 = vcmp.eq.s32.totalorder %v225, %v233
        %vm254 = vcmp.eq.s32.totalorder %v225, %v234
        %vm255 = vcmp.eq.s32.totalorder %v226, %v233
        %vm256 = vcmp.eq.s32.totalorder %v226, %v234
        %vm257 = vcmp.eq.s32.totalorder %v227, %v233
        %vm258 = vcmp.eq.s32.totalorder %v227, %v234
        %vm259 = vcmp.eq.s32.totalorder %v228, %v233
        %vm260 = vcmp.eq.s32.totalorder %v228, %v234
        %vm261 = vcmp.eq.s32.totalorder %v229, %v233
        %vm262 = vcmp.eq.s32.totalorder %v229, %v234
        %vm263 = vcmp.eq.s32.totalorder %v230, %v233
        %vm264 = vcmp.eq.s32.totalorder %v230, %v234
        %vm265 = vcmp.eq.s32.totalorder %v231, %v233
        %vm266 = vcmp.eq.s32.totalorder %v231, %v234
        %v267 = vsel %vm235, 1.0, 0.0
        %v268 = vsel %vm236, 1.0, 0.0
        %v269 = vsel %vm237, 1.0, 0.0
        %v270 = vsel %vm238, 1.0, 0.0
        %v271 = vsel %vm239, 1.0, 0.0
        %v272 = vsel %vm240, 1.0, 0.0
        %v273 = vsel %vm241, 1.0, 0.0
        %v274 = vsel %vm242, 1.0, 0.0
        %v275 = vsel %vm243, 1.0, 0.0
        %v276 = vsel %vm244, 1.0, 0.0
        %v277 = vsel %vm245, 1.0, 0.0
        %v278 = vsel %vm246, 1.0, 0.0
        %v279 = vsel %vm247, 1.0, 0.0
        %v280 = vsel %vm248, 1.0, 0.0
        %v281 = vsel %vm249, 1.0, 0.0
        %v282 = vsel %vm250, 1.0, 0.0
        %v283 = vsel %vm251, 1.0, 0.0
        %v284 = vsel %vm252, 1.0, 0.0
        %v285 = vsel %vm253, 1.0, 0.0
        %v286 = vsel %vm254, 1.0, 0.0
        %v287 = vsel %vm255, 1.0, 0.0
        %v288 = vsel %vm256, 1.0, 0.0
        %v289 = vsel %vm257, 1.0, 0.0
        %v290 = vsel %vm258, 1.0, 0.0
        %v291 = vsel %vm259, 1.0, 0.0
        %v292 = vsel %vm260, 1.0, 0.0
        %v293 = vsel %vm261, 1.0, 0.0
        %v294 = vsel %vm262, 1.0, 0.0
        %v295 = vsel %vm263, 1.0, 0.0
        %v296 = vsel %vm264, 1.0, 0.0
        %v297 = vsel %vm265, 1.0, 0.0
        %v298 = vsel %vm266, 1.0, 0.0
        %v299 = vld [vmem:[%s212] sm:$0x3]
        %v300 = vperm.slane %v299, 0
        %v301 = vperm.slane %v299, 1
        %vm302 = vcmp.eq.s32.totalorder %v216, %v300
        %vm303 = vcmp.eq.s32.totalorder %v216, %v301
        %vm304 = vcmp.eq.s32.totalorder %v217, %v300
        %vm305 = vcmp.eq.s32.totalorder %v217, %v301
        %vm306 = vcmp.eq.s32.totalorder %v218, %v300
        %vm307 = vcmp.eq.s32.totalorder %v218, %v301
        %vm308 = vcmp.eq.s32.totalorder %v219, %v300
        %vm309 = vcmp.eq.s32.totalorder %v219, %v301
        %vm310 = vcmp.eq.s32.totalorder %v220, %v300
        %vm311 = vcmp.eq.s32.totalorder %v220, %v301
        %vm312 = vcmp.eq.s32.totalorder %v221, %v300
        %vm313 = vcmp.eq.s32.totalorder %v221, %v301
        %vm314 = vcmp.eq.s32.totalorder %v222, %v300
        %vm315 = vcmp.eq.s32.totalorder %v222, %v301
        %vm316 = vcmp.eq.s32.totalorder %v223, %v300
        %vm317 = vcmp.eq.s32.totalorder %v223, %v301
        %vm318 = vcmp.eq.s32.totalorder %v224, %v300
        %vm319 = vcmp.eq.s32.totalorder %v224, %v301
        %vm320 = vcmp.eq.s32.totalorder %v225, %v300
        %vm321 = vcmp.eq.s32.totalorder %v225, %v301
        %vm322 = vcmp.eq.s32.totalorder %v226, %v300
        %vm323 = vcmp.eq.s32.totalorder %v226, %v301
        %vm324 = vcmp.eq.s32.totalorder %v227, %v300
        %vm325 = vcmp.eq.s32.totalorder %v227, %v301
        %vm326 = vcmp.eq.s32.totalorder %v228, %v300
        %vm327 = vcmp.eq.s32.totalorder %v228, %v301
        %vm328 = vcmp.eq.s32.totalorder %v229, %v300
        %vm329 = vcmp.eq.s32.totalorder %v229, %v301
        %vm330 = vcmp.eq.s32.totalorder %v230, %v300
        %vm331 = vcmp.eq.s32.totalorder %v230, %v301
        %vm332 = vcmp.eq.s32.totalorder %v231, %v300
        %vm333 = vcmp.eq.s32.totalorder %v231, %v301
        %v334 = vsel %vm302, 1.0, 0.0
        %v335 = vsel %vm303, 1.0, 0.0
        %v336 = vsel %vm304, 1.0, 0.0
        %v337 = vsel %vm305, 1.0, 0.0
        %v338 = vsel %vm306, 1.0, 0.0
        %v339 = vsel %vm307, 1.0, 0.0
        %v340 = vsel %vm308, 1.0, 0.0
        %v341 = vsel %vm309, 1.0, 0.0
        %v342 = vsel %vm310, 1.0, 0.0
        %v343 = vsel %vm311, 1.0, 0.0
        %v344 = vsel %vm312, 1.0, 0.0
        %v345 = vsel %vm313, 1.0, 0.0
        %v346 = vsel %vm314, 1.0, 0.0
        %v347 = vsel %vm315, 1.0, 0.0
        %v348 = vsel %vm316, 1.0, 0.0
        %v349 = vsel %vm317, 1.0, 0.0
        %v350 = vsel %vm318, 1.0, 0.0
        %v351 = vsel %vm319, 1.0, 0.0
        %v352 = vsel %vm320, 1.0, 0.0
        %v353 = vsel %vm321, 1.0, 0.0
        %v354 = vsel %vm322, 1.0, 0.0
        %v355 = vsel %vm323, 1.0, 0.0
        %v356 = vsel %vm324, 1.0, 0.0
        %v357 = vsel %vm325, 1.0, 0.0
        %v358 = vsel %vm326, 1.0, 0.0
        %v359 = vsel %vm327, 1.0, 0.0
        %v360 = vsel %vm328, 1.0, 0.0
        %v361 = vsel %vm329, 1.0, 0.0
        %v362 = vsel %vm330, 1.0, 0.0
        %v363 = vsel %vm331, 1.0, 0.0
        %v364 = vsel %vm332, 1.0, 0.0
        %v365 = vsel %vm333, 1.0, 0.0
        %v366 = vld [vmem:[%s0] sm:$0xff]
        %v367 = vld [vmem:[%s0 + $0x8] sm:$0xff]
        %v368 = vld [vmem:[%s0 + $0x10] sm:$0xff]
        %369 = vmatpush.msra.mxu0 %v297
        %370 = vmatpush.msra.mxu0 %v295
        %371 = vmatpush.msra.mxu0 %v293
        %372 = vmatpush.msra.mxu0 %v291
        %373 = vmatpush.msra.mxu0 %v289
        %374 = vmatpush.msra.mxu0 %v287
        %375 = vmatpush.msra.mxu0 %v285
        %376 = vmatpush.msra.mxu0 %v283
        %377 = vmatpush.msra.mxu0 %v281
        %378 = vmatpush.msra.mxu0 %v279
        %379 = vmatpush.msra.mxu0 %v277
        %380 = vmatpush.msra.mxu0 %v275
        %381 = vmatpush.msra.mxu0 %v273
        %382 = vmatpush.msra.mxu0 %v271
        %383 = vmatpush.msra.mxu0 %v269
        %384 = vmatpush.msra.mxu0 %v267
        %385 = vmatmul.f32.gmra.mxu0 %v366
        %v386 = vpop.f32.mrf.mxu0
        %v387 = vadd.f32 0.0, %v386
        %388 = vmatmul.f32.gmra.mxu0 %v367
        %v389 = vpop.f32.mrf.mxu0
        %v390 = vadd.f32 0.0, %v389
        %391 = vmatmul.f32.gmra.mxu0 %v368
        %v392 = vpop.f32.mrf.mxu0
        %v393 = vadd.f32 0.0, %v392
        %394 = vdwg.mxu0
        %395 = vmatpush.msra.mxu0 %v298
        %396 = vmatpush.msra.mxu0 %v296
        %397 = vmatpush.msra.mxu0 %v294
        %398 = vmatpush.msra.mxu0 %v292
        %399 = vmatpush.msra.mxu0 %v290
        %400 = vmatpush.msra.mxu0 %v288
        %401 = vmatpush.msra.mxu0 %v286
        %402 = vmatpush.msra.mxu0 %v284
        %403 = vmatpush.msra.mxu0 %v282
        %404 = vmatpush.msra.mxu0 %v280
        %405 = vmatpush.msra.mxu0 %v278
        %406 = vmatpush.msra.mxu0 %v276
        %407 = vmatpush.msra.mxu0 %v274
        %408 = vmatpush.msra.mxu0 %v272
        %409 = vmatpush.msra.mxu0 %v270
        %410 = vmatpush.msra.mxu0 %v268
        %411 = vmatmul.f32.gmra.mxu0 %v366
        %v412 = vpop.f32.mrf.mxu0
        %v413 = vadd.f32 0.0, %v412
        %414 = vmatmul.f32.gmra.mxu0 %v367
        %v415 = vpop.f32.mrf.mxu0
        %v416 = vadd.f32 0.0, %v415
        %417 = vmatmul.f32.gmra.mxu0 %v368
        %v418 = vpop.f32.mrf.mxu0
        %v419 = vadd.f32 0.0, %v418
        %420 = vdwg.mxu0
        %v421 = vld [vmem:[%s1] sm:$0xff]
        %v422 = vld [vmem:[%s1 + $0x8] sm:$0xff]
        %v423 = vld [vmem:[%s1 + $0x10] sm:$0xff]
        %424 = vmatpush.msra.mxu0 %v364
        %425 = vmatpush.msra.mxu0 %v362
        %426 = vmatpush.msra.mxu0 %v360
        %427 = vmatpush.msra.mxu0 %v358
        %428 = vmatpush.msra.mxu0 %v356
        %429 = vmatpush.msra.mxu0 %v354
        %430 = vmatpush.msra.mxu0 %v352
        %431 = vmatpush.msra.mxu0 %v350
        %432 = vmatpush.msra.mxu0 %v348
        %433 = vmatpush.msra.mxu0 %v346
        %434 = vmatpush.msra.mxu0 %v344
        %435 = vmatpush.msra.mxu0 %v342
        %436 = vmatpush.msra.mxu0 %v340
        %437 = vmatpush.msra.mxu0 %v338
        %438 = vmatpush.msra.mxu0 %v336
        %439 = vmatpush.msra.mxu0 %v334
        %440 = vmatmul.f32.gmra.mxu0 %v421
        %v441 = vpop.f32.mrf.mxu0
        %v442 = vadd.f32 0.0, %v441
        %443 = vmatmul.f32.gmra.mxu0 %v422
        %v444 = vpop.f32.mrf.mxu0
        %v445 = vadd.f32 0.0, %v444
        %446 = vmatmul.f32.gmra.mxu0 %v423
        %v447 = vpop.f32.mrf.mxu0
        %v448 = vadd.f32 0.0, %v447
        %449 = vdwg.mxu0
        %450 = vmatpush.msra.mxu0 %v365
        %451 = vmatpush.msra.mxu0 %v363
        %452 = vmatpush.msra.mxu0 %v361
        %453 = vmatpush.msra.mxu0 %v359
        %454 = vmatpush.msra.mxu0 %v357
        %455 = vmatpush.msra.mxu0 %v355
        %456 = vmatpush.msra.mxu0 %v353
        %457 = vmatpush.msra.mxu0 %v351
        %458 = vmatpush.msra.mxu0 %v349
        %459 = vmatpush.msra.mxu0 %v347
        %460 = vmatpush.msra.mxu0 %v345
        %461 = vmatpush.msra.mxu0 %v343
        %462 = vmatpush.msra.mxu0 %v341
        %463 = vmatpush.msra.mxu0 %v339
        %464 = vmatpush.msra.mxu0 %v337
        %465 = vmatpush.msra.mxu0 %v335
        %466 = vmatmul.f32.gmra.mxu0 %v421
        %v467 = vpop.f32.mrf.mxu0
        %v468 = vadd.f32 0.0, %v467
        %469 = vmatmul.f32.gmra.mxu0 %v422
        %v470 = vpop.f32.mrf.mxu0
        %v471 = vadd.f32 0.0, %v470
        %472 = vmatmul.f32.gmra.mxu0 %v423
        %v473 = vpop.f32.mrf.mxu0
        %v474 = vadd.f32 0.0, %v473
        %475 = vdwg.mxu0
        %v476 = vmul.f32 %v387, %v442
        %v477 = vmul.f32 %v413, %v468
        %v478 = vmul.f32 %v390, %v445
        %v479 = vmul.f32 %v416, %v471
        %v480 = vmul.f32 %v393, %v448
        %v481 = vmul.f32 %v419, %v474
        %v482 = vadd.f32 %v476, %v478
        %v483 = vadd.f32 %v482, %v480
        %v484 = vrot.slane %v483, 4
        %v485 = vadd.f32 %v483, %v484
        %v486 = vrot.slane %v485, 2
        %v487 = vadd.f32 %v485, %v486
        %v488 = vrot.slane %v487, 1
        %v489 = vadd.f32 %v487, %v488
        %v490 = vadd.f32 %v477, %v479
        %v491 = vadd.f32 %v490, %v481
        %v492 = vrot.slane %v491, 4
        %v493 = vadd.f32 %v491, %v492
        %v494 = vrot.slane %v493, 2
        %v495 = vadd.f32 %v493, %v494
        %v496 = vrot.slane %v495, 1
        %v497 = vadd.f32 %v495, %v496
        %v500 = vrot.slane %v497, 7
        %vm501 = vcmask 1040384
        %v502 = vsel %vm501, %v489, %v500
        %v504 = vlaneseq
        %vm505 = vcmp.ge.s32.totalorder %v504, 0
        %vm506 = vcmp.lt.s32.totalorder %v504, 256
        %vm507 = vmand %vm505, %vm506
        %508 = vst.msk [vmem:[%s203] sm:$0x3] %vm507, %v502
        %s509 = sand.u32 %s120, 1
        %s510 = scalar_lea.sflag [#allocation3], %s509
        %s511 = sand.u32 %s120, 1
        %s512 = smul.addr %s511, 2
        %s513 = scalar_lea.vmem [#allocation2], %s512
        // Predicated region
        $region37: #{mf_forward.1} parent=35 // pred_check
          %p514 = pneg %p130
        $region38: #{mf_forward.1} parent=35 // pred_check_branch
          %516 = sbr.rel (%p514) target = $region40
        $region39: #{mf_forward.1} parent=35 // pred_region
          %s517 = smul.u32 2, %s18
          %519 = vsyncadd %s510, 0
          %s520 = scalar_lea.hbm %s4, %s517
          %s522 = sshll.u32 %s513, 4
          %s523 = int_to_ptr.vmem [resolvable:$true] %s522
          %s524 = sshll.u32 %s520, 4
          %s525 = int_to_ptr.hbm [resolvable:$true] %s524
          %527 = dma.vmem_to_hbm [thread:$0]  %s523, 32, %s525, %s510
        $region40: #{mf_forward.1} parent=35 // pred_fallthru
          _
      $region36: #{mf_forward.1} parent=5 // pred_fallthru
        _
      %p528 = scmp.le.s32.totalorder 2, %s13
      // Predicated region
      $region41: #{mf_forward.1} parent=5 // pred_check
        %p529 = pneg %p528
      $region42: #{mf_forward.1} parent=5 // pred_check_branch
        %531 = sbr.rel (%p529) target = $region44
      $region43: #{mf_forward.1} parent=5 // pred_region
        %s532 = ssub.s32 %s13, 2
        // Predicated region
        $region45: #{mf_forward.1} parent=43 // pred_check
          %p533 = pneg %p136
        $region46: #{mf_forward.1} parent=43 // pred_check_branch
          %535 = sbr.rel (%p533) target = $region48
        $region47: #{mf_forward.1} parent=43 // pred_region
          %s536 = sand.u32 %s121, 1
          %s537 = scalar_lea.sflag [#allocation3], %s536
          %s538 = sand.u32 %s121, 1
          %s539 = smul.addr %s538, 2
          %s540 = scalar_lea.vmem [#allocation2], %s539
          %542 = dma.done %s537, 32
        $region48: #{mf_forward.1} parent=43 // pred_fallthru
          _
      $region44: #{mf_forward.1} parent=5 // pred_fallthru
        _
    $region6: #{mf_forward.1} parent=1 // loop_footer
      %s17 = sadd.s32 1, %s13
    $region7: #{mf_forward.1} parent=1 // loop_footer_branch
      %12 = sbr.rel target = $region3
    $region8: #{mf_forward.1} parent=1 // loop_exit
      _
    %543 = vsyncpa [#allocation3], 1
    %s544 = scalar_lea.sflag [#allocation3], 1
    %545 = vsyncpa %s544, 1

</llo_original>
